<compile_context>
chip_gen: v6e
topology: v6e:2x2x1
jax: 0.10.0
libtpu: 0.0.40
codegen_flags: <defaults>
</compile_context>

<pallas_src>
import jax
import jax.numpy as jnp
from jax.experimental import pallas as pl
from jax.experimental.pallas import tpu as pltpu

_LANE = 128
_TILE_ROWS = 1024   # sublane rows per block (multiple of 8); 1 MiB in / 2 MiB out (f32)


def _nominal_update_kernel(vel_ref, x_ref, o_ref):
    # vel_ref: (1, 1) f32 in SMEM         — runtime velocity scalar
    # x_ref:   (2, TILE_ROWS, 128) VMEM   — x_ref[0] = theta (x[...,2]), x_ref[1] = omega (x[...,3])
    # o_ref:   (4, TILE_ROWS, 128) VMEM   — 4 output state components, batch on lanes/sublanes
    v = vel_ref[0, 0]
    theta = x_ref[0].astype(jnp.float32)                # dense (TILE_ROWS, 128) tile
    omega = x_ref[1]
    o_ref[0] = (v * jnp.sin(theta)).astype(o_ref.dtype)
    o_ref[1] = (v * jnp.cos(theta)).astype(o_ref.dtype)
    o_ref[2] = omega
    o_ref[3] = jnp.zeros_like(omega)


def dubins_car_nominal_update(x, velocity):
    """Pallas equivalent of DubinsCarNominalUpdate(dynamics_config)(x)."""
    orig_shape = x.shape
    D = orig_shape[-1]
    assert D >= 4, "state dim must be >= 4"

    # --- glue (plain JAX): flatten batch, keep only the 2 columns we read,
    # transpose so the flattened batch N is the fast axis, pad to a lane
    # multiple, and take the free contiguous reshape to (2, rows, 128).
    x2d = x.reshape(-1, D)                               # (N, D)
    N = x2d.shape[0]
    xt = x2d[:, 2:4].T                                   # (2, N): [theta; omega]
    n_pad = pl.cdiv(N, _LANE) * _LANE
    if n_pad != N:
        xt = jnp.pad(xt, ((0, 0), (0, n_pad - N)))
    rows = n_pad // _LANE
    xt3 = xt.reshape(2, rows, _LANE)                     # sublane-dense SoA input

    # Block rows: multiple of 8 when tiling, or the full (possibly small) dim.
    tile_rows = min(_TILE_ROWS, rows)
    num_tiles = pl.cdiv(rows, tile_rows)                 # ragged last block is masked by Pallas
    itemsize = jnp.dtype(x.dtype).itemsize

    vel = jnp.asarray(velocity, dtype=jnp.float32).reshape(1, 1)

    out3 = pl.pallas_call(
        _nominal_update_kernel,
        out_shape=jax.ShapeDtypeStruct((4, rows, _LANE), x.dtype),
        grid=(num_tiles,),
        in_specs=[
            pl.BlockSpec(memory_space=pltpu.MemorySpace.SMEM),           # velocity scalar
            pl.BlockSpec((2, tile_rows, _LANE), lambda i: (0, i, 0)),    # theta/omega
        ],
        out_specs=pl.BlockSpec((4, tile_rows, _LANE), lambda i: (0, i, 0)),
        compiler_params=pltpu.CompilerParams(
            dimension_semantics=("parallel",),           # shards grid across v7x's 2 TCs
        ),
        cost_estimate=pl.CostEstimate(
            flops=2 * n_pad,
            transcendentals=2 * n_pad,
            bytes_accessed=(2 + 4) * n_pad * itemsize,
        ),
    )(vel, xt3)

    # --- glue: back to the PyTorch layout (..., 4); drop lane padding.
    # TODO(synk): if the downstream consumer accepts the SoA (4, rows, 128)
    # layout, return `out3` directly and skip this transpose (halves HBM glue).
    out2d = out3.reshape(4, n_pad)[:, :N].T              # (N, 4)
    return out2d.reshape(orig_shape[:-1] + (4,))


def _reference(x, velocity):
    x1 = velocity * jnp.sin(x[..., 2])
    x2 = velocity * jnp.cos(x[..., 2])
    x3 = x[..., 3]
    return jnp.stack([x1, x2, x3, jnp.zeros_like(x3)], axis=-1)


if __name__ == "__main__":
    # Deterministic config (module's __init__ only stores a scalar velocity).
    dynamics_config = {"velocity": 1.5}
    velocity = dynamics_config["velocity"]

    # Small example input: batch=2, seq=8, state_dim=4  ->  x: (2, 8, 4)
    key = jax.random.PRNGKey(0)
    x = jax.random.normal(key, (2, 8, 4), dtype=jnp.float32)

    out = dubins_car_nominal_update(x, velocity)
    out = jax.block_until_ready(out)

    ref = _reference(x, velocity)
    assert out.shape == ref.shape, (out.shape, ref.shape)
    assert jnp.allclose(out, ref, atol=1e-5, rtol=1e-5), "mismatch vs reference"

    print("KERNEL_OK")
</pallas_src>

<mosaic_0001>
module attributes {stable_mosaic.version = 11 : i64} {
  func.func @_nominal_update_kernel(%arg0: i32, %arg1: memref<1x1xf32, #tpu.memory_space<smem>>, %arg2: memref<2x1x128xf32, #tpu.memory_space<vmem>>, %arg3: memref<4x1x128xf32, #tpu.memory_space<vmem>>) attributes {dimension_semantics = [#tpu.dimension_semantics<parallel>], iteration_bounds = array<i64: 1>, scalar_prefetch = 0 : i64, scratch_operands = 0 : i64, tpu.core_type = #tpu.core_type<tc>, window_params = [{transform_indices = @transform_0, window_bounds = array<i64: 1, 1>}, {transform_indices = @transform_1, window_bounds = array<i64: 2, 1, 128>}, {transform_indices = @transform_2, window_bounds = array<i64: 4, 1, 128>}]} {
    %c0 = arith.constant 0 : index
    %c0_0 = arith.constant 0 : index
    %0 = memref.load %arg1[%c0, %c0_0] : memref<1x1xf32, #tpu.memory_space<smem>>
    %c0_1 = arith.constant 0 : index
    %c0_2 = arith.constant 0 : index
    %c0_3 = arith.constant 0 : index
    %1 = vector.load %arg2[%c0_1, %c0_2, %c0_3] : memref<2x1x128xf32, #tpu.memory_space<vmem>>, vector<1x1x128xf32>
    %2 = vector.shape_cast %1 : vector<1x1x128xf32> to vector<1x128xf32>
    %c1 = arith.constant 1 : index
    %c0_4 = arith.constant 0 : index
    %c0_5 = arith.constant 0 : index
    %3 = vector.load %arg2[%c1, %c0_4, %c0_5] : memref<2x1x128xf32, #tpu.memory_space<vmem>>, vector<1x1x128xf32>
    %4 = vector.shape_cast %3 : vector<1x1x128xf32> to vector<1x128xf32>
    %5 = math.sin %2 : vector<1x128xf32>
    %6 = vector.broadcast %0 : f32 to vector<1x128xf32>
    %7 = arith.mulf %6, %5 : vector<1x128xf32>
    %c0_6 = arith.constant 0 : index
    %c0_7 = arith.constant 0 : index
    %c0_8 = arith.constant 0 : index
    %8 = vector.load %arg3[%c0_6, %c0_7, %c0_8] : memref<4x1x128xf32, #tpu.memory_space<vmem>>, vector<1x1x128xf32>
    %9 = vector.shape_cast %8 : vector<1x1x128xf32> to vector<1x128xf32>
    %10 = vector.shape_cast %7 : vector<1x128xf32> to vector<1x1x128xf32>
    tpu.vector_store %arg3[%c0_6, %c0_7, %c0_8], %10 {strides = array<i32>} : memref<4x1x128xf32, #tpu.memory_space<vmem>>, vector<1x1x128xf32>,
    %11 = math.cos %2 : vector<1x128xf32>
    %12 = vector.broadcast %0 : f32 to vector<1x128xf32>
    %13 = arith.mulf %12, %11 : vector<1x128xf32>
    %c1_9 = arith.constant 1 : index
    %c0_10 = arith.constant 0 : index
    %c0_11 = arith.constant 0 : index
    %14 = vector.load %arg3[%c1_9, %c0_10, %c0_11] : memref<4x1x128xf32, #tpu.memory_space<vmem>>, vector<1x1x128xf32>
    %15 = vector.shape_cast %14 : vector<1x1x128xf32> to vector<1x128xf32>
    %16 = vector.shape_cast %13 : vector<1x128xf32> to vector<1x1x128xf32>
    tpu.vector_store %arg3[%c1_9, %c0_10, %c0_11], %16 {strides = array<i32>} : memref<4x1x128xf32, #tpu.memory_space<vmem>>, vector<1x1x128xf32>,
    %c2 = arith.constant 2 : index
    %c0_12 = arith.constant 0 : index
    %c0_13 = arith.constant 0 : index
    %17 = vector.load %arg3[%c2, %c0_12, %c0_13] : memref<4x1x128xf32, #tpu.memory_space<vmem>>, vector<1x1x128xf32>
    %18 = vector.shape_cast %17 : vector<1x1x128xf32> to vector<1x128xf32>
    %19 = vector.shape_cast %4 : vector<1x128xf32> to vector<1x1x128xf32>
    tpu.vector_store %arg3[%c2, %c0_12, %c0_13], %19 {strides = array<i32>} : memref<4x1x128xf32, #tpu.memory_space<vmem>>, vector<1x1x128xf32>,
    %cst = arith.constant 0.000000e+00 : f32
    %20 = vector.broadcast %cst : f32 to vector<1x128xf32>
    %c3 = arith.constant 3 : index
    %c0_14 = arith.constant 0 : index
    %c0_15 = arith.constant 0 : index
    %21 = vector.load %arg3[%c3, %c0_14, %c0_15] : memref<4x1x128xf32, #tpu.memory_space<vmem>>, vector<1x1x128xf32>
    %22 = vector.shape_cast %21 : vector<1x1x128xf32> to vector<1x128xf32>
    %23 = vector.shape_cast %20 : vector<1x128xf32> to vector<1x1x128xf32>
    tpu.vector_store %arg3[%c3, %c0_14, %c0_15], %23 {strides = array<i32>} : memref<4x1x128xf32, #tpu.memory_space<vmem>>, vector<1x1x128xf32>,
    return
  }
  func.func @transform_0(%arg0: i32) -> (i32, i32) {
    %c0_i32 = arith.constant 0 : i32
    %c0_i32_0 = arith.constant 0 : i32
    %c0_i32_1 = arith.constant 0 : i32
    return %c0_i32, %c0_i32_0 : i32, i32
  }
  func.func @transform_1(%arg0: i32) -> (i32, i32, i32) {
    %c0_i32 = arith.constant 0 : i32
    %c0_i32_0 = arith.constant 0 : i32
    %c0_i32_1 = arith.constant 0 : i32
    return %c0_i32, %arg0, %c0_i32_0 : i32, i32, i32
  }
  func.func @transform_2(%arg0: i32) -> (i32, i32, i32) {
    %c0_i32 = arith.constant 0 : i32
    %c0_i32_0 = arith.constant 0 : i32
    %c0_i32_1 = arith.constant 0 : i32
    return %c0_i32, %arg0, %c0_i32_0 : i32, i32, i32
  }
}

</mosaic_0001>

<llo_original>
// kernel: tpu_custom_call.1
$region0: #{tpu_custom_call.1}
  #allocation0 [shape = 'u32[]', space=smem, size = 0x4, offset = 0x4, fixed_abs, tag = 'smem constant byte address 0x4 - core index']
  #allocation1 [shape = 'u32[144,128]{1,0:T(1,128)}', space=vmem, size = 0x12000, scoped, tag = 'internal scratch']
  #allocation2 [shape = 'f32[1,1]{1,0:T(1,128)S(6)}', space=smem, size = 0x200, scoped, tag = 'scoped memory for tpu_custom_call.1']
  %s0 = inlined_call_operand.<no memory space> [shape: f32[1,1], index: 0, kind: input, shape index: {}]
  %s1 = inlined_call_operand.vmem [shape: f32[2,1,128], index: 1, kind: input, shape index: {}]
  %s2 = inlined_call_operand.hbm [shape: f32[4,1,128], index: 2, kind: output, shape index: {}]
  %s3 = sld [smem:[#allocation0]]
  $region18: #{tpu_custom_call.1} parent=0
    _
  %s5 = ssub.s32 1, %s3
  %s6 = scalar_select 0, %s5, %s3
  %7 = sst [smem:[#allocation2]] %s0
  $region1: #{tpu_custom_call.1} parent=0
    #allocation3 [shape = 'u8[2048]{0}', space=vmem, size = 0x800, scoped, tag = 'output window, operand 0, single buffered']
    #allocation4 [shape = 's32[1]{0}', space=sflag, size = 0x4, scoped, tag = 'scoped memory for tpu_custom_call.1']
    %8 = vsyncpa [#allocation4], 0
    // Predicated region
    $region2: #{tpu_custom_call.1} parent=1 // pred_check
      _
    $region3: #{tpu_custom_call.1} parent=1 // pred_check_branch
      %10 = sbr.rel (0) target = $region5
    $region4: #{tpu_custom_call.1} parent=1 // pred_region
      _
    $region5: #{tpu_custom_call.1} parent=1 // pred_fallthru
      _
    // Predicated region
    $region6: #{tpu_custom_call.1} parent=1 // pred_check
      _
    $region7: #{tpu_custom_call.1} parent=1 // pred_check_branch
      %12 = sbr.rel (0) target = $region9
    $region8: #{tpu_custom_call.1} parent=1 // pred_region
      _
    $region9: #{tpu_custom_call.1} parent=1 // pred_fallthru
      _
    %s13 = sld [smem:[#allocation2]]
    %v14 = vld [vmem:[%s1] sm:$0x1]
    %s15 = scalar_lea.vmem %s1, 1
    %v16 = vld [vmem:[%s15] sm:$0x1]
    %v17 = vand.u32 2147483647, %v14
    %vm18 = vcmp.le.f32.partialorder %v17, 0.7853982
    %vm19 = vcmp.lt.s32.totalorder %v14, 0
    %v20 = vand.u32 %v14, 2139095040
    %v21 = vshrl.u32 %v20, 23
    %v22 = vsub.s32 %v21, 127
    %v23 = vand.u32 2147483647, %v14
    %v24 = vand.u32 %v23, 8388607
    %v25 = vor.u32 %v24, 8388608
    %v26 = vsub.s32 0, %v25
    %v27 = vadd.s32 %v22, 1
    %vm28 = vcmp.gt.s32.totalorder %v27, 0
    %v29 = vsel %vm28, %v27, 0
    %v30 = vshrl.u32 %v29, 5
    %v31 = vand.u32 %v29, 31
    %v32 = vsub.s32 32, %v31
    %v33 = vshrl.u32 683565275, %v32
    %v34 = vshll.u32 683565275, %v31
    %v35 = vshrl.u32 2475754826, %v32
    %v36 = vor.u32 %v34, %v35
    %v37 = vshll.u32 2475754826, %v31
    %v38 = vshrl.u32 2131351028, %v32
    %v39 = vor.u32 %v37, %v38
    %v40 = vshll.u32 2131351028, %v31
    %v41 = vshrl.u32 2102212464, %v32
    %v42 = vor.u32 %v40, %v41
    %v43 = vshll.u32 2102212464, %v31
    %v44 = vshrl.u32 920167782, %v32
    %v45 = vor.u32 %v43, %v44
    %v46 = vshll.u32 920167782, %v31
    %v47 = vshrl.u32 1326507024, %v32
    %v48 = vor.u32 %v46, %v47
    %vm49 = vcmp.lt.s32.totalorder %v30, 1
    %vm50 = vcmp.lt.s32.totalorder %v30, 2
    %vm51 = vcmp.lt.s32.totalorder %v30, 3
    %vm52 = vcmp.lt.s32.totalorder %v30, 4
    %v53 = vsel %vm49, %v33, %v36
    %v54 = vsel %vm52, %v42, 2102212464
    %v55 = vsel %vm51, %v39, %v54
    %v56 = vsel %vm50, %v53, %v55
    %v57 = vsel %vm49, %v36, %v39
    %v58 = vsel %vm52, %v45, 920167782
    %v59 = vsel %vm51, %v42, %v58
    %v60 = vsel %vm50, %v57, %v59
    %v61 = vsel %vm49, %v39, %v42
    %v62 = vsel %vm52, %v48, 1326507024
    %v63 = vsel %vm51, %v45, %v62
    %v64 = vsel %vm50, %v61, %v63
    %v65 = vshll.u32 %v25, 8
    %v66 = vmul.u32.u64.compose %v65, %v64
    %v67 = vextract.low.u32 %v66
    %v68 = vextract.high.u32 %v66
    %v69 = vmul.u32.u64.compose %v65, %v60
    %v70 = vextract.low.u32 %v69
    %v71 = vextract.high.u32 %v69
    %v72 = vmul.u32 %v65, %v56
    %v73 = vadd.s32 %v68, %v70
    %vm74 = vc.u32 %v68, %v70
    %v75 = vadd.s32 %v71, 1
    %v76 = vsel %vm74, %v75, %v71
    %v77 = vadd.s32 %v72, %v76
    %v78 = vadd.s32 %v77, 536870912
    %v79 = vshrl.u32 %v78, 30
    %v80 = vshll.u32 %v79, 30
    %v81 = vsub.s32 %v77, %v80
    %vm82 = vcmp.lt.s32.totalorder %v81, 0
    %v83 = vsub.s32 0, %v81
    %v84 = vsel %vm82, %v83, %v81
    %v85 = vclz %v84
    %v86 = vsub.s32 %v85, 2
    %vm87 = vcmp.gt.s32.totalorder 0, %v86
    %v88 = vsel %vm87, 0, %v86
    %v89 = vsub.s32 32, %v88
    %v90 = vshll.u32 %v81, %v88
    %v91 = vshrl.u32 %v73, %v89
    %v92 = vor.u32 %v90, %v91
    %v93 = vsub.s32 4294967266, %v88
    %v94 = vadd.s32 %v93, 127
    %v95 = vshll.u32 %v94, 23
    %v96 = vor.u32 4788187, %v95
    %v97 = vand.u32 2147483647, %v96
    %v99 = vcvt.s32.f32 %v92
    %v100 = vmul.f32 %v99, %v97
    %v101 = vxor.u32 %v100, 2147483648
    %v102 = vsel %vm19, %v101, %v100
    %v103 = vsub.s32 4, %v79
    %v104 = vsel %vm19, %v103, %v79
    %v105 = vsel %vm18, %v14, %v102
    %v106 = vsel %vm18, 0, %v104
    %v107 = vcosq.f32.pop %v105
    %v108 = vsinq.f32.pop %v105
    %vm109 = vweird.f32 %v14
    %v110 = vadd.s32 %v106, 3
    %v111 = vand.u32 %v110, 3
    %vm112 = vcmp.lt.s32.totalorder %v111, 2
    %vm113 = vcmp.eq.s32.totalorder %v111, 0
    %v114 = vxor.u32 %v108, 2147483648
    %v115 = vsel %vm113, %v107, %v114
    %vm116 = vcmp.eq.s32.totalorder %v111, 2
    %v117 = vxor.u32 %v107, 2147483648
    %v118 = vsel %vm116, %v117, %v108
    %v119 = vsel %vm112, %v115, %v118
    %v120 = vsel %vm109, nan, %v119
    %v121 = vstv %s13
    %v122 = vmul.f32 %v121, %v120
    %123 = vst [vmem:[#allocation3] sm:$0x1] %v122
    %v124 = vand.u32 2147483647, %v14
    %vm125 = vcmp.le.f32.partialorder %v124, 0.7853982
    %vm126 = vcmp.lt.s32.totalorder %v14, 0
    %v127 = vand.u32 %v14, 2139095040
    %v128 = vshrl.u32 %v127, 23
    %v129 = vsub.s32 %v128, 127
    %v130 = vand.u32 2147483647, %v14
    %v131 = vand.u32 %v130, 8388607
    %v132 = vor.u32 %v131, 8388608
    %v133 = vsub.s32 0, %v132
    %v134 = vadd.s32 %v129, 1
    %vm135 = vcmp.gt.s32.totalorder %v134, 0
    %v136 = vsel %vm135, %v134, 0
    %v137 = vshrl.u32 %v136, 5
    %v138 = vand.u32 %v136, 31
    %v139 = vsub.s32 32, %v138
    %v140 = vshrl.u32 683565275, %v139
    %v141 = vshll.u32 683565275, %v138
    %v142 = vshrl.u32 2475754826, %v139
    %v143 = vor.u32 %v141, %v142
    %v144 = vshll.u32 2475754826, %v138
    %v145 = vshrl.u32 2131351028, %v139
    %v146 = vor.u32 %v144, %v145
    %v147 = vshll.u32 2131351028, %v138
    %v148 = vshrl.u32 2102212464, %v139
    %v149 = vor.u32 %v147, %v148
    %v150 = vshll.u32 2102212464, %v138
    %v151 = vshrl.u32 920167782, %v139
    %v152 = vor.u32 %v150, %v151
    %v153 = vshll.u32 920167782, %v138
    %v154 = vshrl.u32 1326507024, %v139
    %v155 = vor.u32 %v153, %v154
    %vm156 = vcmp.lt.s32.totalorder %v137, 1
    %vm157 = vcmp.lt.s32.totalorder %v137, 2
    %vm158 = vcmp.lt.s32.totalorder %v137, 3
    %vm159 = vcmp.lt.s32.totalorder %v137, 4
    %v160 = vsel %vm156, %v140, %v143
    %v161 = vsel %vm159, %v149, 2102212464
    %v162 = vsel %vm158, %v146, %v161
    %v163 = vsel %vm157, %v160, %v162
    %v164 = vsel %vm156, %v143, %v146
    %v165 = vsel %vm159, %v152, 920167782
    %v166 = vsel %vm158, %v149, %v165
    %v167 = vsel %vm157, %v164, %v166
    %v168 = vsel %vm156, %v146, %v149
    %v169 = vsel %vm159, %v155, 1326507024
    %v170 = vsel %vm158, %v152, %v169
    %v171 = vsel %vm157, %v168, %v170
    %v172 = vshll.u32 %v132, 8
    %v173 = vmul.u32.u64.compose %v172, %v171
    %v174 = vextract.low.u32 %v173
    %v175 = vextract.high.u32 %v173
    %v176 = vmul.u32.u64.compose %v172, %v167
    %v177 = vextract.low.u32 %v176
    %v178 = vextract.high.u32 %v176
    %v179 = vmul.u32 %v172, %v163
    %v180 = vadd.s32 %v175, %v177
    %vm181 = vc.u32 %v175, %v177
    %v182 = vadd.s32 %v178, 1
    %v183 = vsel %vm181, %v182, %v178
    %v184 = vadd.s32 %v179, %v183
    %v185 = vadd.s32 %v184, 536870912
    %v186 = vshrl.u32 %v185, 30
    %v187 = vshll.u32 %v186, 30
    %v188 = vsub.s32 %v184, %v187
    %vm189 = vcmp.lt.s32.totalorder %v188, 0
    %v190 = vsub.s32 0, %v188
    %v191 = vsel %vm189, %v190, %v188
    %v192 = vclz %v191
    %v193 = vsub.s32 %v192, 2
    %vm194 = vcmp.gt.s32.totalorder 0, %v193
    %v195 = vsel %vm194, 0, %v193
    %v196 = vsub.s32 32, %v195
    %v197 = vshll.u32 %v188, %v195
    %v198 = vshrl.u32 %v180, %v196
    %v199 = vor.u32 %v197, %v198
    %v200 = vsub.s32 4294967266, %v195
    %v201 = vadd.s32 %v200, 127
    %v202 = vshll.u32 %v201, 23
    %v203 = vor.u32 4788187, %v202
    %v204 = vand.u32 2147483647, %v203
    %v206 = vcvt.s32.f32 %v199
    %v207 = vmul.f32 %v206, %v204
    %v208 = vxor.u32 %v207, 2147483648
    %v209 = vsel %vm126, %v208, %v207
    %v210 = vsub.s32 4, %v186
    %v211 = vsel %vm126, %v210, %v186
    %v212 = vsel %vm125, %v14, %v209
    %v213 = vsel %vm125, 0, %v211
    %v214 = vcosq.f32.pop %v212
    %v215 = vsinq.f32.pop %v212
    %vm216 = vweird.f32 %v14
    %v217 = vand.u32 %v213, 3
    %vm218 = vcmp.lt.s32.totalorder %v217, 2
    %vm219 = vcmp.eq.s32.totalorder %v217, 0
    %v220 = vxor.u32 %v215, 2147483648
    %v221 = vsel %vm219, %v214, %v220
    %vm222 = vcmp.eq.s32.totalorder %v217, 2
    %v223 = vxor.u32 %v214, 2147483648
    %v224 = vsel %vm222, %v223, %v215
    %v225 = vsel %vm218, %v221, %v224
    %v226 = vsel %vm216, nan, %v225
    %v227 = vmul.f32 %v121, %v226
    %s228 = scalar_lea.vmem [#allocation3], 1
    %229 = vst [vmem:[%s228] sm:$0x1] %v227
    %s230 = scalar_lea.vmem [#allocation3], 2
    %231 = vst [vmem:[%s230] sm:$0x1] %v16
    %s232 = scalar_lea.vmem [#allocation3], 3
    %233 = vst [vmem:[%s232] sm:$0x1] 0.0
    // Predicated region
    $region10: #{tpu_custom_call.1} parent=1 // pred_check
      _
    $region11: #{tpu_custom_call.1} parent=1 // pred_check_branch
      %235 = sbr.rel (0) target = $region13
    $region12: #{tpu_custom_call.1} parent=1 // pred_region
      %s237 = ssub.s32 64, 64
      %238 = vsyncadd [#allocation4], %s237
      %s239 = sshll.u32 [#allocation3], 4
      %s240 = int_to_ptr.vmem [resolvable:$true] %s239
      %245 = dma.vmem_to_hbm [thread:$0]  %s240, 64, %s2, [#allocation4], 16, 16, 1
    $region13: #{tpu_custom_call.1} parent=1 // pred_fallthru
      _
    // Predicated region
    $region14: #{tpu_custom_call.1} parent=1 // pred_check
      _
    $region15: #{tpu_custom_call.1} parent=1 // pred_check_branch
      %247 = sbr.rel (0) target = $region17
    $region16: #{tpu_custom_call.1} parent=1 // pred_region
      %248 = dma.done [#allocation4], 64
    $region17: #{tpu_custom_call.1} parent=1 // pred_fallthru
      _
    %249 = vsyncpa [#allocation4], 1

</llo_original>
